<compile_context>
chip_gen: v7x
topology: tpu7x:2x2x1
jax: 0.10.0
libtpu: 0.0.40
codegen_flags: <defaults>
</compile_context>

<pallas_src>
import functools

import jax
import jax.numpy as jnp
from jax.experimental import pallas as pl
from jax.experimental.pallas import tpu as pltpu

BN_EPS = 1e-5
LANE = 128
SUBLANE = 8


def _round_up(x, m):
    return (x + m - 1) // m * m


# ---------------------------------------------------------------------------
# Kernel
# ---------------------------------------------------------------------------
def _residual_block_kernel(add_residual, has_proj, out_p,
                           x_ref, w_ref, b_ref, o_ref):
    """One batch tile: y = relu(x @ W' + b') [+ residual]."""
    x = x_ref[...]                                             # (TM, in_p) bf16/f32
    # Single wide MXU push; if has_proj, W = [W_folded | W_residual].
    y = jnp.dot(x, w_ref[...], preferred_element_type=jnp.float32)
    y = y + b_ref[...]                                         # (1, wcols) f32, broadcast once
    h = jnp.maximum(y[:, :out_p], 0.0)                         # ReLU on main branch (f32)
    if add_residual:
        if has_proj:
            h = h + y[:, out_p:]                               # projection residual (already in y)
        else:
            h = h + x.astype(jnp.float32)                      # identity residual (in_p == out_p)
    o_ref[...] = h.astype(o_ref.dtype)


# ---------------------------------------------------------------------------
# Host-side wrapper
# ---------------------------------------------------------------------------
def _fold_bn(w, b, gamma, beta, mean, var, eps=BN_EPS):
    """Fold eval-mode BatchNorm1d into the preceding Linear (w: (in,out))."""
    scale = gamma * jax.lax.rsqrt(var + eps)                   # (out,)
    w_f = w * scale[None, :]
    b_f = (b - mean) * scale + beta
    return w_f, b_f


def residual_block(x, params, *, use_residual=True,
                   matmul_dtype=jnp.bfloat16, tile_m=256):
    """Fused ResidualBlock forward (eval mode) in a single pallas_call."""
    n, in_sz = x.shape
    w = params["w"]                                            # (in, out), pre-transposed
    out_sz = w.shape[1]

    w_f, b_f = _fold_bn(w, params["b"], params["gamma"], params["beta"],
                        params["mean"], params["var"])

    has_proj = bool(use_residual) and (in_sz != out_sz)
    if has_proj:
        assert "wr" in params and "br" in params, \
            "projection residual requires 'wr'/'br' when in_sz != out_sz"

    # Lane-dense padding of feature dims.
    in_p = _round_up(in_sz, LANE)
    out_p = _round_up(out_sz, LANE)

    def pad2(a, rows, cols):
        return jnp.pad(a, ((0, rows - a.shape[0]), (0, cols - a.shape[1])))

    w_pad = pad2(w_f, in_p, out_p)
    b_pad = jnp.pad(b_f, (0, out_p - out_sz))
    if has_proj:
        wr_pad = pad2(params["wr"], in_p, out_p)
        br_pad = jnp.pad(params["br"], (0, out_p - out_sz))
        w_cat = jnp.concatenate([w_pad, wr_pad], axis=1)       # (in_p, 2*out_p)
        b_cat = jnp.concatenate([b_pad, br_pad], axis=0)       # (2*out_p,)
    else:
        w_cat, b_cat = w_pad, b_pad
    wcols = w_cat.shape[1]

    w_cat = w_cat.astype(matmul_dtype)
    b_cat = b_cat.reshape(1, wcols).astype(jnp.float32)

    # Batch tiling (pipelined grid over rows; weights stay VMEM-resident).
    tm = min(tile_m, _round_up(n, SUBLANE))
    n_p = _round_up(n, tm)
    x_pad = jnp.pad(x, ((0, n_p - n), (0, in_p - in_sz))).astype(matmul_dtype)

    grid = (n_p // tm,)
    out = pl.pallas_call(
        functools.partial(_residual_block_kernel, bool(use_residual), has_proj, out_p),
        out_shape=jax.ShapeDtypeStruct((n_p, out_p), jnp.float32),
        grid=grid,
        in_specs=[
            pl.BlockSpec((tm, in_p), lambda i: (i, 0)),        # activation tile
            pl.BlockSpec((in_p, wcols), lambda i: (0, 0)),     # weights: resident
            pl.BlockSpec((1, wcols), lambda i: (0, 0)),        # bias: resident
        ],
        out_specs=pl.BlockSpec((tm, out_p), lambda i: (i, 0)),
        compiler_params=pltpu.CompilerParams(
            dimension_semantics=("parallel",)),
    )(x_pad, w_cat, b_cat)

    return out[:n, :out_sz]


# ---------------------------------------------------------------------------
# Pure-JAX reference (literal PyTorch eval-mode math) and init helpers
# ---------------------------------------------------------------------------
def residual_block_ref(x, params, use_residual=True):
    h = x @ params["w"] + params["b"]
    inv_std = jax.lax.rsqrt(params["var"] + BN_EPS)
    h = (h - params["mean"]) * inv_std * params["gamma"] + params["beta"]
    h = jnp.maximum(h, 0.0)
    if use_residual:
        if "wr" in params:
            h = h + x @ params["wr"] + params["br"]
        else:
            h = h + x
    return h


def init_residual_block_params(key, in_sz, out_sz, use_residual=True):
    """Shapes mimic PyTorch; BN stats randomized to exercise the fold."""
    ks = jax.random.split(key, 8)
    bound = 1.0 / jnp.sqrt(in_sz)
    params = {
        "w": jax.random.uniform(ks[0], (in_sz, out_sz), jnp.float32, -bound, bound),
        "b": jax.random.uniform(ks[1], (out_sz,), jnp.float32, -bound, bound),
        "gamma": jax.random.uniform(ks[2], (out_sz,), jnp.float32, 0.5, 1.5),
        "beta": jax.random.normal(ks[3], (out_sz,), jnp.float32) * 0.1,
        "mean": jax.random.normal(ks[4], (out_sz,), jnp.float32) * 0.1,
        "var": jax.random.uniform(ks[5], (out_sz,), jnp.float32, 0.5, 1.5),
    }
    if use_residual and in_sz != out_sz:
        params["wr"] = jax.random.uniform(ks[6], (in_sz, out_sz), jnp.float32, -bound, bound)
        params["br"] = jax.random.uniform(ks[7], (out_sz,), jnp.float32, -bound, bound)
    return params


if __name__ == "__main__":
    key = jax.random.PRNGKey(0)
    batch = 8

    # (in_sz, out_sz, use_residual): projection residual, identity residual, no residual
    configs = [(32, 64, True), (64, 64, True), (32, 64, False)]

    for in_sz, out_sz, use_res in configs:
        key, k_x, k_p = jax.random.split(key, 3)
        x = jax.random.normal(k_x, (batch, in_sz), dtype=jnp.float32)
        params = init_residual_block_params(k_p, in_sz, out_sz, use_residual=use_res)

        out = residual_block(x, params, use_residual=use_res)
        out = jax.block_until_ready(out)
        assert out.shape == (batch, out_sz), out.shape

        ref = residual_block_ref(x, params, use_residual=use_res)
        # bf16 matmul inputs vs f32 reference -> loose tolerance.
        max_err = float(jnp.max(jnp.abs(out - ref)))
        assert max_err < 1e-1, f"max abs err {max_err} (in={in_sz}, out={out_sz}, res={use_res})"

    print("KERNEL_OK")
</pallas_src>

<mosaic_0001>
module attributes {stable_mosaic.version = 11 : i64} {
  func.func @_residual_block_kernel(%arg0: i32, %arg1: memref<8x128xbf16, #tpu.memory_space<vmem>>, %arg2: memref<128x256xbf16, #tpu.memory_space<vmem>>, %arg3: memref<1x256xf32, #tpu.memory_space<vmem>>, %arg4: memref<8x128xf32, #tpu.memory_space<vmem>>) attributes {dimension_semantics = [#tpu.dimension_semantics<parallel>], iteration_bounds = array<i64: 1>, scalar_prefetch = 0 : i64, scratch_operands = 0 : i64, tpu.core_type = #tpu.core_type<tc>, window_params = [{transform_indices = @transform_0, window_bounds = array<i64: 8, 128>}, {pipeline_mode = #tpu.pipeline_mode<synchronous>, transform_indices = @transform_1, window_bounds = array<i64: 128, 256>}, {pipeline_mode = #tpu.pipeline_mode<synchronous>, transform_indices = @transform_2, window_bounds = array<i64: 1, 256>}, {transform_indices = @transform_3, window_bounds = array<i64: 8, 128>}]} {
    %c0 = arith.constant 0 : index
    %c0_0 = arith.constant 0 : index
    %0 = vector.load %arg1[%c0, %c0_0] : memref<8x128xbf16, #tpu.memory_space<vmem>>, vector<8x128xbf16>
    %c0_1 = arith.constant 0 : index
    %c0_2 = arith.constant 0 : index
    %1 = vector.load %arg2[%c0_1, %c0_2] : memref<128x256xbf16, #tpu.memory_space<vmem>>, vector<128x256xbf16>
    %cst = arith.constant dense<0.000000e+00> : vector<8x256xf32>
    %2 = tpu.matmul %0, %1, %cst {dimension_numbers = #tpu.dot_dimension_numbers<[1], [0], [0], [1], [0, 0, 1, 1], [], []>} : vector<8x128xbf16>, vector<128x256xbf16>, vector<8x256xf32> -> vector<8x256xf32>
    %c0_3 = arith.constant 0 : index
    %c0_4 = arith.constant 0 : index
    %3 = vector.load %arg3[%c0_3, %c0_4] : memref<1x256xf32, #tpu.memory_space<vmem>>, vector<1x256xf32>
    %4 = vector.broadcast %3 : vector<1x256xf32> to vector<8x256xf32>
    %5 = arith.addf %2, %4 : vector<8x256xf32>
    %6 = vector.extract_strided_slice %5 {offsets = [0, 0], sizes = [8, 128], strides = [1, 1]} : vector<8x256xf32> to vector<8x128xf32>
    %cst_5 = arith.constant 0.000000e+00 : f32
    %7 = vector.broadcast %cst_5 : f32 to vector<8x128xf32>
    %8 = arith.maximumf %6, %7 : vector<8x128xf32>
    %9 = vector.extract_strided_slice %5 {offsets = [0, 128], sizes = [8, 128], strides = [1, 1]} : vector<8x256xf32> to vector<8x128xf32>
    %10 = arith.addf %8, %9 : vector<8x128xf32>
    %c0_6 = arith.constant 0 : index
    %c0_7 = arith.constant 0 : index
    %11 = vector.load %arg4[%c0_6, %c0_7] : memref<8x128xf32, #tpu.memory_space<vmem>>, vector<8x128xf32>
    tpu.vector_store %arg4[%c0_6, %c0_7], %10 {strides = array<i32>} : memref<8x128xf32, #tpu.memory_space<vmem>>, vector<8x128xf32>,
    return
  }
  func.func @transform_0(%arg0: i32) -> (i32, i32) {
    %c0_i32 = arith.constant 0 : i32
    %c0_i32_0 = arith.constant 0 : i32
    return %arg0, %c0_i32 : i32, i32
  }
  func.func @transform_1(%arg0: i32) -> (i32, i32) {
    %c0_i32 = arith.constant 0 : i32
    %c0_i32_0 = arith.constant 0 : i32
    %c0_i32_1 = arith.constant 0 : i32
    return %c0_i32, %c0_i32_0 : i32, i32
  }
  func.func @transform_2(%arg0: i32) -> (i32, i32) {
    %c0_i32 = arith.constant 0 : i32
    %c0_i32_0 = arith.constant 0 : i32
    %c0_i32_1 = arith.constant 0 : i32
    return %c0_i32, %c0_i32_0 : i32, i32
  }
  func.func @transform_3(%arg0: i32) -> (i32, i32) {
    %c0_i32 = arith.constant 0 : i32
    %c0_i32_0 = arith.constant 0 : i32
    return %arg0, %c0_i32 : i32, i32
  }
}

</mosaic_0001>

<llo_original>
// kernel: tpu_custom_call.1
$region0: #{tpu_custom_call.1}
  #allocation0 [shape = 'u32[]', space=smem, size = 0x4, offset = 0x4, fixed_abs, tag = 'smem constant byte address 0x4 - core index']
  #allocation1 [shape = 'u32[144,128]{1,0:T(1,128)}', space=vmem, size = 0x12000, scoped, tag = 'internal scratch']
  %s0 = inlined_call_operand.hbm [shape: bf16[8,128], index: 0, kind: input, shape index: {}]
  %s1 = inlined_call_operand.hbm [shape: bf16[128,256], index: 1, kind: input, shape index: {}]
  %s2 = inlined_call_operand.vmem [shape: f32[1,256], index: 2, kind: input, shape index: {}]
  %s3 = inlined_call_operand.hbm [shape: f32[8,128], index: 3, kind: output, shape index: {}]
  %s4 = sld [smem:[#allocation0]]
  $region30: #{tpu_custom_call.1} parent=0
    _
  %s6 = ssub.s32 1, %s4
  %s7 = scalar_select 0, %s6, %s4
  $region1: #{tpu_custom_call.1} parent=0
    #allocation2 [shape = 'u8[2048]{0}', space=vmem, size = 0x800, scoped, tag = 'input window, operand 0, single buffered']
    #allocation3 [shape = 's32[1]{0}', space=sflag, size = 0x4, scoped, tag = 'scoped memory for tpu_custom_call.1']
    #allocation4 [shape = 's32[1]{0}', space=sflag, size = 0x4, scoped, tag = 'scoped memory for tpu_custom_call.1']
    #allocation5 [shape = 'u8[65536]{0}', space=vmem, size = 0x10000, scoped, tag = 'input window, operand 1, single buffered']
    #allocation6 [shape = 's32[1]{0}', space=sflag, size = 0x4, scoped, tag = 'scoped memory for tpu_custom_call.1']
    #allocation7 [shape = 'u8[4096]{0}', space=vmem, size = 0x1000, scoped, tag = 'output window, operand 0, single buffered']
    %8 = vsyncpa [#allocation3], 0
    %9 = vsyncpa [#allocation6], 0
    %10 = vsyncpa [#allocation4], 0
    // Predicated region
    $region2: #{tpu_custom_call.1} parent=1 // pred_check
      _
    $region3: #{tpu_custom_call.1} parent=1 // pred_check_branch
      %12 = sbr.rel (0) target = $region5
    $region4: #{tpu_custom_call.1} parent=1 // pred_region
      %s14 = ssub.s32 64, 64
      %15 = vsyncadd [#allocation3], %s14
      %s17 = sshll.u32 [#allocation2], 4
      %s18 = int_to_ptr.vmem [resolvable:$true] %s17
      %20 = dma.hbm_to_vmem [thread:$0]  %s0, 64, %s18, [#allocation3]
    $region5: #{tpu_custom_call.1} parent=1 // pred_fallthru
      _
    // Predicated region
    $region6: #{tpu_custom_call.1} parent=1 // pred_check
      _
    $region7: #{tpu_custom_call.1} parent=1 // pred_check_branch
      %22 = sbr.rel (0) target = $region9
    $region8: #{tpu_custom_call.1} parent=1 // pred_region
      %s24 = ssub.s32 2048, 2048
      %25 = vsyncadd [#allocation6], %s24
      %s26 = sshll.u32 [#allocation5], 4
      %s27 = int_to_ptr.vmem [resolvable:$true] %s26
      %32 = dma.hbm_to_vmem [thread:$0]  %s1, 2048, %s27, [#allocation6], 128, 128, 8
    $region9: #{tpu_custom_call.1} parent=1 // pred_fallthru
      _
    // Predicated region
    $region10: #{tpu_custom_call.1} parent=1 // pred_check
      _
    $region11: #{tpu_custom_call.1} parent=1 // pred_check_branch
      %34 = sbr.rel (0) target = $region13
    $region12: #{tpu_custom_call.1} parent=1 // pred_region
      _
    $region13: #{tpu_custom_call.1} parent=1 // pred_fallthru
      _
    // Predicated region
    $region14: #{tpu_custom_call.1} parent=1 // pred_check
      _
    $region15: #{tpu_custom_call.1} parent=1 // pred_check_branch
      %36 = sbr.rel (0) target = $region17
    $region16: #{tpu_custom_call.1} parent=1 // pred_region
      %37 = dma.done [#allocation3], 64
    $region17: #{tpu_custom_call.1} parent=1 // pred_fallthru
      _
    // Predicated region
    $region18: #{tpu_custom_call.1} parent=1 // pred_check
      _
    $region19: #{tpu_custom_call.1} parent=1 // pred_check_branch
      %39 = sbr.rel (0) target = $region21
    $region20: #{tpu_custom_call.1} parent=1 // pred_region
      %40 = dma.done [#allocation6], 2048
    $region21: #{tpu_custom_call.1} parent=1 // pred_fallthru
      _
    %v42 = vld [vmem:[#allocation2] sm:$0xf]
    %v43 = vld [vmem:[#allocation5] sm:$0xff]
    %v44 = vld [vmem:[#allocation5 + $0x8] sm:$0xff]
    %v45 = vld [vmem:[#allocation5 + $0x10] sm:$0xff]
    %v46 = vld [vmem:[#allocation5 + $0x18] sm:$0xff]
    %v47 = vld [vmem:[#allocation5 + $0x20] sm:$0xff]
    %v48 = vld [vmem:[#allocation5 + $0x28] sm:$0xff]
    %v49 = vld [vmem:[#allocation5 + $0x30] sm:$0xff]
    %v50 = vld [vmem:[#allocation5 + $0x38] sm:$0xff]
    %v51 = vld [vmem:[#allocation5 + $0x40] sm:$0xff]
    %v52 = vld [vmem:[#allocation5 + $0x48] sm:$0xff]
    %v53 = vld [vmem:[#allocation5 + $0x50] sm:$0xff]
    %v54 = vld [vmem:[#allocation5 + $0x58] sm:$0xff]
    %v55 = vld [vmem:[#allocation5 + $0x60] sm:$0xff]
    %v56 = vld [vmem:[#allocation5 + $0x68] sm:$0xff]
    %v57 = vld [vmem:[#allocation5 + $0x70] sm:$0xff]
    %v58 = vld [vmem:[#allocation5 + $0x78] sm:$0xff]
    %v59 = vld [vmem:[%s2] sm:$0x3]
    %v61 = vlaneseq
    %v62 = vshrl.u32 %v61, 7
    %v63 = vsub.s32 0, %v62
    %v64 = vrot.slane %v59, %v63
    %v65 = vlaneseq
    %v66 = vshrl.u32 %v65, 7
    %v67 = vsub.s32 1, %v66
    %v68 = vrot.slane %v59, %v67
    %v87 = vunpack.c.l.b16 %v43
    %v88 = vunpack.c.h.b16 %v43
    %v89 = vunpack.c.l.b16 %v44
    %v90 = vunpack.c.h.b16 %v44
    %v91 = vunpack.c.l.b16 %v45
    %v92 = vunpack.c.h.b16 %v45
    %v93 = vunpack.c.l.b16 %v46
    %v94 = vunpack.c.h.b16 %v46
    %v95 = vunpack.c.l.b16 %v47
    %v96 = vunpack.c.h.b16 %v47
    %v97 = vunpack.c.l.b16 %v48
    %v98 = vunpack.c.h.b16 %v48
    %v99 = vunpack.c.l.b16 %v49
    %v100 = vunpack.c.h.b16 %v49
    %v101 = vunpack.c.l.b16 %v50
    %v102 = vunpack.c.h.b16 %v50
    %v103 = vunpack.c.l.b16 %v51
    %v104 = vunpack.c.h.b16 %v51
    %v105 = vunpack.c.l.b16 %v52
    %v106 = vunpack.c.h.b16 %v52
    %v107 = vunpack.c.l.b16 %v53
    %v108 = vunpack.c.h.b16 %v53
    %v109 = vunpack.c.l.b16 %v54
    %v110 = vunpack.c.h.b16 %v54
    %v111 = vunpack.c.l.b16 %v55
    %v112 = vunpack.c.h.b16 %v55
    %v113 = vunpack.c.l.b16 %v56
    %v114 = vunpack.c.h.b16 %v56
    %v115 = vunpack.c.l.b16 %v57
    %v116 = vunpack.c.h.b16 %v57
    %v117 = vunpack.c.l.b16 %v58
    %v118 = vunpack.c.h.b16 %v58
    %v119 = vpack.c.b16 %v89, %v87
    %v120 = vpack.c.b16 %v90, %v88
    %v121 = vpack.c.b16 %v93, %v91
    %v122 = vpack.c.b16 %v94, %v92
    %v123 = vpack.c.b16 %v97, %v95
    %v124 = vpack.c.b16 %v98, %v96
    %v125 = vpack.c.b16 %v101, %v99
    %v126 = vpack.c.b16 %v102, %v100
    %v127 = vpack.c.b16 %v105, %v103
    %v128 = vpack.c.b16 %v106, %v104
    %v129 = vpack.c.b16 %v109, %v107
    %v130 = vpack.c.b16 %v110, %v108
    %v131 = vpack.c.b16 %v113, %v111
    %v132 = vpack.c.b16 %v114, %v112
    %v133 = vpack.c.b16 %v117, %v115
    %v134 = vpack.c.b16 %v118, %v116
    %151 = vmatprep.subr.bf16.mxu0 %v120
    %152 = vmatpush1.bf16.msra.mxu0 %v119
    %153 = vmatprep.subr.bf16.mxu0 %v122
    %154 = vmatpush1.bf16.msra.mxu0 %v121
    %155 = vmatprep.subr.bf16.mxu0 %v124
    %156 = vmatpush1.bf16.msra.mxu0 %v123
    %157 = vmatprep.subr.bf16.mxu0 %v126
    %158 = vmatpush1.bf16.msra.mxu0 %v125
    %159 = vmatprep.subr.bf16.mxu0 %v128
    %160 = vmatpush1.bf16.msra.mxu0 %v127
    %161 = vmatprep.subr.bf16.mxu0 %v130
    %162 = vmatpush1.bf16.msra.mxu0 %v129
    %163 = vmatprep.subr.bf16.mxu0 %v132
    %164 = vmatpush1.bf16.msra.mxu0 %v131
    %165 = vmatprep.subr.bf16.mxu0 %v134
    %166 = vmatpush1.bf16.msra.mxu0 %v133
    %167 = vmatprep.subr.bf16.mxu0 0
    %168 = vmatpush1.bf16.msra.mxu0 0
    %169 = vmatprep.subr.bf16.mxu0 0
    %170 = vmatpush1.bf16.msra.mxu0 0
    %171 = vmatprep.subr.bf16.mxu0 0
    %172 = vmatpush1.bf16.msra.mxu0 0
    %173 = vmatprep.subr.bf16.mxu0 0
    %174 = vmatpush1.bf16.msra.mxu0 0
    %175 = vmatprep.subr.bf16.mxu0 0
    %176 = vmatpush1.bf16.msra.mxu0 0
    %177 = vmatprep.subr.bf16.mxu0 0
    %178 = vmatpush1.bf16.msra.mxu0 0
    %179 = vmatprep.subr.bf16.mxu0 0
    %180 = vmatpush1.bf16.msra.mxu0 0
    %181 = vmatprep.subr.bf16.mxu0 0
    %182 = vmatpush1.bf16.msra.mxu0 0
    %183 = vmatprep.mubr.bf16.mxu0 0
    %184 = vmatmul.mubr.bf16.gmra.mrb[0].mxu0 %v42
    %v185 = vpop.f32.mrb[0].mxu0
    %v186 = vadd.f32 %v64, %v185
    %v187 = vpop.f32.mrb[0].mxu0
    %v188 = vadd.f32 %v68, %v187
    %v189 = vpop.f32.mrb[0].mxu0
    %v190 = vpop.f32.mrb[0].mxu0
    %191 = vdwg.mxu0
    %v192 = vmax.f32 %v186, 0.0
    %v193 = vadd.f32 %v192, %v188
    %194 = vst [vmem:[#allocation7] sm:$0xff] %v193
    // Predicated region
    $region22: #{tpu_custom_call.1} parent=1 // pred_check
      _
    $region23: #{tpu_custom_call.1} parent=1 // pred_check_branch
      %196 = sbr.rel (0) target = $region25
    $region24: #{tpu_custom_call.1} parent=1 // pred_region
      %s198 = ssub.s32 128, 128
      %199 = vsyncadd [#allocation4], %s198
      %s201 = sshll.u32 [#allocation7], 4
      %s202 = int_to_ptr.vmem [resolvable:$true] %s201
      %204 = dma.vmem_to_hbm [thread:$0]  %s202, 128, %s3, [#allocation4]
    $region25: #{tpu_custom_call.1} parent=1 // pred_fallthru
      _
    // Predicated region
    $region26: #{tpu_custom_call.1} parent=1 // pred_check
      _
    $region27: #{tpu_custom_call.1} parent=1 // pred_check_branch
      %206 = sbr.rel (0) target = $region29
    $region28: #{tpu_custom_call.1} parent=1 // pred_region
      %207 = dma.done [#allocation4], 128
    $region29: #{tpu_custom_call.1} parent=1 // pred_fallthru
      _
    %208 = vsyncpa [#allocation3], 1
    %209 = vsyncpa [#allocation6], 1
    %210 = vsyncpa [#allocation4], 1

</llo_original>
